<compile_context>
chip_gen: v7x
topology: tpu7x:2x2x1
jax: 0.10.0
libtpu: 0.0.40
codegen_flags: <defaults>
</compile_context>

<pallas_src>
import jax
import jax.numpy as jnp
from jax import lax
from jax.experimental import pallas as pl
from jax.experimental.pallas import tpu as pltpu


def _nll_kernel(x_ref, y_ref, out_ref):
    """One grid step: gather x[r, y_r] over the tile and add to the chunk partial."""
    i = pl.program_id(1)  # inner (reduction) step within this chunk

    @pl.when(i == 0)
    def _():
        out_ref[...] = jnp.zeros_like(out_ref)

    x = x_ref[...].astype(jnp.float32)   # (tile_n, C); accumulate in f32
    y = y_ref[...]                       # (tile_n, 1) int32; padded rows carry -1
    c = x.shape[1]
    # (1, C) class-id row; compare broadcasts against (tile_n, 1) labels.
    cls = lax.broadcasted_iota(jnp.int32, (1, c), 1)
    picked = jnp.where(cls == y, x, 0.0)         # only x[r, y_r] survives per row
    part = jnp.sum(picked)                        # lane + sublane reduce (XLU)
    out_ref[...] += jnp.reshape(part, (1, 1, 1))  # scalar partial into resident block


def _pow2_floor(v):
    return 1 << (max(1, int(v)).bit_length() - 1)


def nll_loss(x, y, *, tile_n=None, num_chunks=2,
             vmem_budget_bytes=16 * 1024 * 1024):
    """x: (B, P, C) log-probs (any float dtype); y: (B, P) int labels.

    Returns scalar mean NLL = -(1/(B*P)) * sum_i x[i, y_i].
    """
    b, p, c = x.shape
    n = b * p
    x2 = x.reshape(n, c)                       # keep native dtype (no HBM upcast copy)
    y2 = y.reshape(n, 1).astype(jnp.int32)

    itemsize = jnp.dtype(x2.dtype).itemsize
    # VMEM footprint per row of one double-buffered block set.
    # Lane dim pads to a multiple of 128 (labels occupy 128 lanes * 4B each row).
    c_pad = ((c + 127) // 128) * 128
    row_bytes = 2 * c_pad * itemsize + 2 * 128 * 4
    if tile_n is None:
        tile_n = _pow2_floor(max(32, vmem_budget_bytes // row_bytes))
    # Don't make tiles (much) larger than the problem; keep sublane-friendly size.
    tile_n = max(32, min(int(tile_n), pl.next_power_of_2(max(n, 1))))

    total_steps = pl.cdiv(n, tile_n)
    num_chunks = max(1, min(int(num_chunks), total_steps))
    steps_per_chunk = pl.cdiv(total_steps, num_chunks)
    n_pad = num_chunks * steps_per_chunk * tile_n

    if n_pad > n:
        # Padded rows: x = 0 (finite), label = -1 (never matches a class id).
        x2 = jnp.pad(x2, ((0, n_pad - n), (0, 0)))
        y2 = jnp.pad(y2, ((0, n_pad - n), (0, 0)), constant_values=-1)

    partials = pl.pallas_call(
        _nll_kernel,
        out_shape=jax.ShapeDtypeStruct((num_chunks, 1, 1), jnp.float32),
        grid_spec=pltpu.PrefetchScalarGridSpec(
            num_scalar_prefetch=0,
            grid=(num_chunks, steps_per_chunk),
            in_specs=[
                pl.BlockSpec((tile_n, c),
                             lambda ch, i: (ch * steps_per_chunk + i, 0)),
                pl.BlockSpec((tile_n, 1),
                             lambda ch, i: (ch * steps_per_chunk + i, 0)),
            ],
            out_specs=pl.BlockSpec((1, 1, 1), lambda ch, i: (ch, 0, 0)),
        ),
        compiler_params=pltpu.CompilerParams(
            # outer axis: independent chunks (v7x 2-TC sharding); inner: reduction
            dimension_semantics=("parallel", "arbitrary"),
            # default budget (~16 MiB of block buffers) + slack for intermediates;
            # 32 MiB is within scoped limits on v5e/v6e/v7x.
            vmem_limit_bytes=32 * 1024 * 1024,
        ),
    )(x2, y2)

    return -(jnp.sum(partials) / n)


def _ref_nll(logp, labels):
    b, p, c = logp.shape
    flat = logp.reshape(b * p, c).astype(jnp.float32)
    lab = labels.reshape(b * p, 1)
    return -jnp.mean(jnp.take_along_axis(flat, lab, axis=1)[:, 0])


if __name__ == "__main__":
    key = jax.random.PRNGKey(0)
    k1, k2, k3, k4 = jax.random.split(key, 4)

    # Primary small-shape check (B, P, C) = (2, 64, 8).
    B, P, C = 2, 64, 8
    logits = jax.random.normal(k1, (B, P, C), dtype=jnp.float32)
    logp = jax.nn.log_softmax(logits, axis=-1)          # NLLLoss expects log-probs
    labels = jax.random.randint(k2, (B, P), 0, C, dtype=jnp.int32)

    loss = jax.block_until_ready(nll_loss(logp, labels))
    ref = _ref_nll(logp, labels)
    assert jnp.allclose(loss, ref, atol=1e-5, rtol=1e-5), (loss, ref)

    # Ragged-N check (exercises padding + multi-chunk parallel axis).
    B2, P2, C2 = 2, 50, 8
    logits2 = jax.random.normal(k3, (B2, P2, C2), dtype=jnp.float32)
    logp2 = jax.nn.log_softmax(logits2, axis=-1)
    labels2 = jax.random.randint(k4, (B2, P2), 0, C2, dtype=jnp.int32)

    loss2 = jax.block_until_ready(nll_loss(logp2, labels2, tile_n=32, num_chunks=2))
    ref2 = _ref_nll(logp2, labels2)
    assert jnp.allclose(loss2, ref2, atol=1e-5, rtol=1e-5), (loss2, ref2)

    print("KERNEL_OK")
</pallas_src>

<mosaic_0001>
module attributes {stable_mosaic.version = 11 : i64} {
  func.func @_nll_kernel(%arg0: i32, %arg1: i32, %arg2: memref<128x8xf32, #tpu.memory_space<vmem>>, %arg3: memref<128x1xi32, #tpu.memory_space<vmem>>, %arg4: memref<1x1x1xf32, #tpu.memory_space<vmem>>) attributes {dimension_semantics = [#tpu.dimension_semantics<parallel>, #tpu.dimension_semantics<arbitrary>], iteration_bounds = array<i64: 1, 1>, scalar_prefetch = 0 : i64, scratch_operands = 0 : i64, tpu.core_type = #tpu.core_type<tc>, window_params = [{transform_indices = @transform_0, window_bounds = array<i64: 128, 8>}, {transform_indices = @transform_1, window_bounds = array<i64: 128, 1>}, {transform_indices = @transform_2, window_bounds = array<i64: 1, 1, 1>}]} {
    %c0_i32 = arith.constant 0 : i32
    %0 = arith.cmpi eq, %arg1, %c0_i32 : i32
    %1 = arith.extui %0 : i1 to i32
    %c0_i32_0 = arith.constant 0 : i32
    %2 = arith.cmpi ne, %1, %c0_i32_0 : i32
    scf.if %2 {
      %cst_11 = arith.constant 0.000000e+00 : f32
      %19 = vector.broadcast %cst_11 : f32 to vector<1x1x1xf32>
      %c0_12 = arith.constant 0 : index
      %c0_13 = arith.constant 0 : index
      %c0_14 = arith.constant 0 : index
      %20 = vector.load %arg4[%c0_12, %c0_13, %c0_14] : memref<1x1x1xf32, #tpu.memory_space<vmem>>, vector<1x1x1xf32>
      tpu.vector_store %arg4[%c0_12, %c0_13, %c0_14], %19 {strides = array<i32>} : memref<1x1x1xf32, #tpu.memory_space<vmem>>, vector<1x1x1xf32>,
    } else {
    }
    %c0 = arith.constant 0 : index
    %c0_1 = arith.constant 0 : index
    %3 = vector.load %arg2[%c0, %c0_1] : memref<128x8xf32, #tpu.memory_space<vmem>>, vector<128x8xf32>
    %c0_2 = arith.constant 0 : index
    %c0_3 = arith.constant 0 : index
    %4 = vector.load %arg3[%c0_2, %c0_3] : memref<128x1xi32, #tpu.memory_space<vmem>>, vector<128x1xi32>
    %5 = tpu.iota {dimensions = array<i32: 1>} : vector<1x8xi32>
    %6 = vector.broadcast %5 : vector<1x8xi32> to vector<128x8xi32>
    %7 = vector.broadcast %4 : vector<128x1xi32> to vector<128x8xi32>
    %8 = arith.cmpi eq, %6, %7 : vector<128x8xi32>
    %cst = arith.constant 0.000000e+00 : f32
    %9 = vector.broadcast %cst : f32 to vector<128x8xf32>
    %10 = arith.select %8, %3, %9 : vector<128x8xi1>, vector<128x8xf32>
    %11 = vector.shape_cast %10 : vector<128x8xf32> to vector<1x128x8xf32>
    %cst_4 = arith.constant dense<0.000000e+00> : vector<1xf32>
    %12 = vector.multi_reduction <add>, %11, %cst_4 [1, 2] : vector<1x128x8xf32> to vector<1xf32>
    %13 = vector.shape_cast %12 : vector<1xf32> to vector<1x1x1xf32>
    %14 = vector.extract %13[0, 0, 0] : f32 from vector<1x1x1xf32>
    %c0_5 = arith.constant 0 : index
    %c0_6 = arith.constant 0 : index
    %c0_7 = arith.constant 0 : index
    %15 = vector.load %arg4[%c0_5, %c0_6, %c0_7] : memref<1x1x1xf32, #tpu.memory_space<vmem>>, vector<1x1x1xf32>
    %16 = vector.broadcast %14 : f32 to vector<1x1x1xf32>
    %17 = arith.addf %15, %16 : vector<1x1x1xf32>
    %c0_8 = arith.constant 0 : index
    %c0_9 = arith.constant 0 : index
    %c0_10 = arith.constant 0 : index
    %18 = vector.load %arg4[%c0_8, %c0_9, %c0_10] : memref<1x1x1xf32, #tpu.memory_space<vmem>>, vector<1x1x1xf32>
    tpu.vector_store %arg4[%c0_8, %c0_9, %c0_10], %17 {strides = array<i32>} : memref<1x1x1xf32, #tpu.memory_space<vmem>>, vector<1x1x1xf32>,
    return
  }
  func.func @transform_0(%arg0: i32, %arg1: i32) -> (i32, i32) {
    %c1_i32 = arith.constant 1 : i32
    %0 = arith.muli %arg0, %c1_i32 : i32
    %1 = arith.addi %0, %arg1 : i32
    %c0_i32 = arith.constant 0 : i32
    %c0_i32_0 = arith.constant 0 : i32
    return %1, %c0_i32 : i32, i32
  }
  func.func @transform_1(%arg0: i32, %arg1: i32) -> (i32, i32) {
    %c1_i32 = arith.constant 1 : i32
    %0 = arith.muli %arg0, %c1_i32 : i32
    %1 = arith.addi %0, %arg1 : i32
    %c0_i32 = arith.constant 0 : i32
    %c0_i32_0 = arith.constant 0 : i32
    return %1, %c0_i32 : i32, i32
  }
  func.func @transform_2(%arg0: i32, %arg1: i32) -> (i32, i32, i32) {
    %c0_i32 = arith.constant 0 : i32
    %c0_i32_0 = arith.constant 0 : i32
    %c0_i32_1 = arith.constant 0 : i32
    return %arg0, %c0_i32, %c0_i32_0 : i32, i32, i32
  }
}

</mosaic_0001>

<llo_original>
// kernel: tpu_custom_call.1
$region0: #{tpu_custom_call.1}
  #allocation0 [shape = 'u32[]', space=smem, size = 0x4, offset = 0x4, fixed_abs, tag = 'smem constant byte address 0x4 - core index']
  #allocation1 [shape = 'u32[144,128]{1,0:T(1,128)}', space=vmem, size = 0x12000, scoped, tag = 'internal scratch']
  %s0 = inlined_call_operand.vmem [shape: f32[128,8], index: 0, kind: input, shape index: {}]
  %s1 = inlined_call_operand.vmem [shape: s32[128,1], index: 1, kind: input, shape index: {}]
  %s2 = inlined_call_operand.hbm [shape: f32[1,1,1], index: 2, kind: output, shape index: {}]
  %s3 = sld [smem:[#allocation0]]
  $region22: #{tpu_custom_call.1} parent=0
    _
  %s5 = ssub.s32 1, %s3
  %s6 = scalar_select 0, %s5, %s3
  $region1: #{tpu_custom_call.1} parent=0
    #allocation2 [shape = 'u8[512]{0}', space=vmem, size = 0x400, scoped, tag = 'output window, operand 0, single buffered']
    #allocation3 [shape = 's32[1]{0}', space=sflag, size = 0x4, scoped, tag = 'scoped memory for tpu_custom_call.1']
    %7 = vsyncpa [#allocation3], 0
    // Predicated region
    $region2: #{tpu_custom_call.1} parent=1 // pred_check
      _
    $region3: #{tpu_custom_call.1} parent=1 // pred_check_branch
      %9 = sbr.rel (0) target = $region5
    $region4: #{tpu_custom_call.1} parent=1 // pred_region
      %s10 = sadd.s32 0, 0
      %s11 = smul.u32 16, %s10
      %p12 = scmp.lt.s32.totalorder %s11, 15
      %s13 = scalar_select %p12, %s11, 15
      %s14 = smul.addr %s13, 8
      %s15 = scalar_lea.vmem %s0, %s14
      %s16 = sadd.s32 0, 0
      %s17 = smul.u32 16, %s16
    $region5: #{tpu_custom_call.1} parent=1 // pred_fallthru
      _
    // Predicated region
    $region6: #{tpu_custom_call.1} parent=1 // pred_check
      _
    $region7: #{tpu_custom_call.1} parent=1 // pred_check_branch
      %19 = sbr.rel (0) target = $region9
    $region8: #{tpu_custom_call.1} parent=1 // pred_region
      %s20 = sadd.s32 0, 0
      %s21 = smul.u32 16, %s20
      %p22 = scmp.lt.s32.totalorder %s21, 15
      %s23 = scalar_select %p22, %s21, 15
      %s24 = smul.addr %s23, 8
      %s25 = scalar_lea.vmem %s1, %s24
      %s26 = sadd.s32 0, 0
      %s27 = smul.u32 16, %s26
    $region9: #{tpu_custom_call.1} parent=1 // pred_fallthru
      _
    %s28 = sadd.s32 0, 0
    %s29 = smul.u32 16, %s28
    %p30 = scmp.lt.s32.totalorder %s29, 15
    %s31 = scalar_select %p30, %s29, 15
    %s32 = smul.addr %s31, 8
    %s33 = scalar_lea.vmem %s0, %s32
    %s34 = sadd.s32 0, 0
    %s35 = smul.u32 16, %s34
    %p36 = scmp.lt.s32.totalorder %s35, 15
    %s37 = scalar_select %p36, %s35, 15
    %s38 = smul.addr %s37, 8
    %s39 = scalar_lea.vmem %s1, %s38
    %s40 = sadd.s32 0, 0
    %s41 = smul.u32 16, %s40
    %p42 = scmp.lt.s32.totalorder %s41, 15
    %s43 = scalar_select %p42, %s41, 15
    %s44 = smul.addr %s43, 8
    %s45 = scalar_lea.vmem %s0, %s44
    %s46 = sadd.s32 0, 0
    %s47 = smul.u32 16, %s46
    %s48 = sadd.s32 0, 0
    %s49 = smul.u32 16, %s48
    %p50 = scmp.lt.s32.totalorder %s49, 15
    %s51 = scalar_select %p50, %s49, 15
    %s52 = smul.addr %s51, 8
    %s53 = scalar_lea.vmem %s1, %s52
    %s54 = sadd.s32 0, 0
    %s55 = smul.u32 16, %s54
    %p56 = scmp.eq.s32.totalorder 0, 0
    // Predicated region
    $region10: #{tpu_custom_call.1} parent=1 // pred_check
      %p57 = pneg %p56
    $region11: #{tpu_custom_call.1} parent=1 // pred_check_branch
      %59 = sbr.rel (%p57) target = $region13
    $region12: #{tpu_custom_call.1} parent=1 // pred_region
      %vm60 = vcmask 0
      %61 = vst.msk [vmem:[#allocation2] sm:$0x1] %vm60, 0.0
    $region13: #{tpu_custom_call.1} parent=1 // pred_fallthru
      _
    %v62 = vld [vmem:[%s45] sm:$0xff]
    %v63 = vld [vmem:[%s45 + $0x8] sm:$0xff]
    %v64 = vld [vmem:[%s45 + $0x10] sm:$0xff]
    %v65 = vld [vmem:[%s45 + $0x18] sm:$0xff]
    %v66 = vld [vmem:[%s45 + $0x20] sm:$0xff]
    %v67 = vld [vmem:[%s45 + $0x28] sm:$0xff]
    %v68 = vld [vmem:[%s45 + $0x30] sm:$0xff]
    %v69 = vld [vmem:[%s45 + $0x38] sm:$0xff]
    %v70 = vld [vmem:[%s45 + $0x40] sm:$0xff]
    %v71 = vld [vmem:[%s45 + $0x48] sm:$0xff]
    %v72 = vld [vmem:[%s45 + $0x50] sm:$0xff]
    %v73 = vld [vmem:[%s45 + $0x58] sm:$0xff]
    %v74 = vld [vmem:[%s45 + $0x60] sm:$0xff]
    %v75 = vld [vmem:[%s45 + $0x68] sm:$0xff]
    %v76 = vld [vmem:[%s45 + $0x70] sm:$0xff]
    %v77 = vld [vmem:[%s45 + $0x78] sm:$0xff]
    %v78 = vld [vmem:[%s53] sm:$0xff]
    %v79 = vld [vmem:[%s53 + $0x8] sm:$0xff]
    %v80 = vld [vmem:[%s53 + $0x10] sm:$0xff]
    %v81 = vld [vmem:[%s53 + $0x18] sm:$0xff]
    %v82 = vld [vmem:[%s53 + $0x20] sm:$0xff]
    %v83 = vld [vmem:[%s53 + $0x28] sm:$0xff]
    %v84 = vld [vmem:[%s53 + $0x30] sm:$0xff]
    %v85 = vld [vmem:[%s53 + $0x38] sm:$0xff]
    %v86 = vld [vmem:[%s53 + $0x40] sm:$0xff]
    %v87 = vld [vmem:[%s53 + $0x48] sm:$0xff]
    %v88 = vld [vmem:[%s53 + $0x50] sm:$0xff]
    %v89 = vld [vmem:[%s53 + $0x58] sm:$0xff]
    %v90 = vld [vmem:[%s53 + $0x60] sm:$0xff]
    %v91 = vld [vmem:[%s53 + $0x68] sm:$0xff]
    %v92 = vld [vmem:[%s53 + $0x70] sm:$0xff]
    %v93 = vld [vmem:[%s53 + $0x78] sm:$0xff]
    %v94 = vlaneseq
    %v95 = vand.u32 %v94, 127
    %96 = vset.pattern.permute.xlu0 0
    %97 = vperm.xlu0 %96, %v78
    %v98 = vpop.permute.xlu0 %97
    %99 = vset.pattern.permute.xlu0 0
    %100 = vperm.xlu0 %99, %v79
    %v101 = vpop.permute.xlu0 %100
    %102 = vset.pattern.permute.xlu0 0
    %103 = vperm.xlu0 %102, %v80
    %v104 = vpop.permute.xlu0 %103
    %105 = vset.pattern.permute.xlu0 0
    %106 = vperm.xlu0 %105, %v81
    %v107 = vpop.permute.xlu0 %106
    %108 = vset.pattern.permute.xlu0 0
    %109 = vperm.xlu0 %108, %v82
    %v110 = vpop.permute.xlu0 %109
    %111 = vset.pattern.permute.xlu0 0
    %112 = vperm.xlu0 %111, %v83
    %v113 = vpop.permute.xlu0 %112
    %114 = vset.pattern.permute.xlu0 0
    %115 = vperm.xlu0 %114, %v84
    %v116 = vpop.permute.xlu0 %115
    %117 = vset.pattern.permute.xlu0 0
    %118 = vperm.xlu0 %117, %v85
    %v119 = vpop.permute.xlu0 %118
    %120 = vset.pattern.permute.xlu0 0
    %121 = vperm.xlu0 %120, %v86
    %v122 = vpop.permute.xlu0 %121
    %123 = vset.pattern.permute.xlu0 0
    %124 = vperm.xlu0 %123, %v87
    %v125 = vpop.permute.xlu0 %124
    %126 = vset.pattern.permute.xlu0 0
    %127 = vperm.xlu0 %126, %v88
    %v128 = vpop.permute.xlu0 %127
    %129 = vset.pattern.permute.xlu0 0
    %130 = vperm.xlu0 %129, %v89
    %v131 = vpop.permute.xlu0 %130
    %132 = vset.pattern.permute.xlu0 0
    %133 = vperm.xlu0 %132, %v90
    %v134 = vpop.permute.xlu0 %133
    %135 = vset.pattern.permute.xlu0 0
    %136 = vperm.xlu0 %135, %v91
    %v137 = vpop.permute.xlu0 %136
    %138 = vset.pattern.permute.xlu0 0
    %139 = vperm.xlu0 %138, %v92
    %v140 = vpop.permute.xlu0 %139
    %141 = vset.pattern.permute.xlu0 0
    %142 = vperm.xlu0 %141, %v93
    %v143 = vpop.permute.xlu0 %142
    %vm144 = vcmp.eq.s32.totalorder %v95, %v98
    %vm145 = vcmp.eq.s32.totalorder %v95, %v101
    %vm146 = vcmp.eq.s32.totalorder %v95, %v104
    %vm147 = vcmp.eq.s32.totalorder %v95, %v107
    %vm148 = vcmp.eq.s32.totalorder %v95, %v110
    %vm149 = vcmp.eq.s32.totalorder %v95, %v113
    %vm150 = vcmp.eq.s32.totalorder %v95, %v116
    %vm151 = vcmp.eq.s32.totalorder %v95, %v119
    %vm152 = vcmp.eq.s32.totalorder %v95, %v122
    %vm153 = vcmp.eq.s32.totalorder %v95, %v125
    %vm154 = vcmp.eq.s32.totalorder %v95, %v128
    %vm155 = vcmp.eq.s32.totalorder %v95, %v131
    %vm156 = vcmp.eq.s32.totalorder %v95, %v134
    %vm157 = vcmp.eq.s32.totalorder %v95, %v137
    %vm158 = vcmp.eq.s32.totalorder %v95, %v140
    %vm159 = vcmp.eq.s32.totalorder %v95, %v143
    %v160 = vsel %vm144, %v62, 0.0
    %v161 = vsel %vm145, %v63, 0.0
    %v162 = vsel %vm146, %v64, 0.0
    %v163 = vsel %vm147, %v65, 0.0
    %v164 = vsel %vm148, %v66, 0.0
    %v165 = vsel %vm149, %v67, 0.0
    %v166 = vsel %vm150, %v68, 0.0
    %v167 = vsel %vm151, %v69, 0.0
    %v168 = vsel %vm152, %v70, 0.0
    %v169 = vsel %vm153, %v71, 0.0
    %v170 = vsel %vm154, %v72, 0.0
    %v171 = vsel %vm155, %v73, 0.0
    %v172 = vsel %vm156, %v74, 0.0
    %v173 = vsel %vm157, %v75, 0.0
    %v174 = vsel %vm158, %v76, 0.0
    %v175 = vsel %vm159, %v77, 0.0
    %vm176 = vcmask 64512
    %v177 = vsel %vm176, %v160, 0.0
    %v178 = vsel %vm176, %v161, 0.0
    %v179 = vadd.f32 %v177, %v178
    %v180 = vsel %vm176, %v162, 0.0
    %v181 = vadd.f32 %v179, %v180
    %v182 = vsel %vm176, %v163, 0.0
    %v183 = vadd.f32 %v181, %v182
    %v184 = vsel %vm176, %v164, 0.0
    %v185 = vadd.f32 %v183, %v184
    %v186 = vsel %vm176, %v165, 0.0
    %v187 = vadd.f32 %v185, %v186
    %v188 = vsel %vm176, %v166, 0.0
    %v189 = vadd.f32 %v187, %v188
    %v190 = vsel %vm176, %v167, 0.0
    %v191 = vadd.f32 %v189, %v190
    %v192 = vsel %vm176, %v168, 0.0
    %v193 = vadd.f32 %v191, %v192
    %v194 = vsel %vm176, %v169, 0.0
    %v195 = vadd.f32 %v193, %v194
    %v196 = vsel %vm176, %v170, 0.0
    %v197 = vadd.f32 %v195, %v196
    %v198 = vsel %vm176, %v171, 0.0
    %v199 = vadd.f32 %v197, %v198
    %v200 = vsel %vm176, %v172, 0.0
    %v201 = vadd.f32 %v199, %v200
    %v202 = vsel %vm176, %v173, 0.0
    %v203 = vadd.f32 %v201, %v202
    %v204 = vsel %vm176, %v174, 0.0
    %v205 = vadd.f32 %v203, %v204
    %v206 = vsel %vm176, %v175, 0.0
    %v207 = vadd.f32 %v205, %v206
    %208 = vadd.xlane.f32.xlu0 %v207
    %v209 = vpop.xlane.xlu0 %208
    %v210 = vrot.slane %v209, 4
    %v211 = vadd.f32 %v209, %v210
    %v212 = vrot.slane %v211, 2
    %v213 = vadd.f32 %v211, %v212
    %v214 = vrot.slane %v213, 1
    %v215 = vadd.f32 %v213, %v214
    %s216 = vtos %v215
    %v217 = vld [vmem:[#allocation2] sm:$0x1]
    %v218 = vstv %s216
    %v219 = vadd.f32 %v217, %v218
    %vm220 = vcmask 0
    %221 = vst.msk [vmem:[#allocation2] sm:$0x1] %vm220, %v219
    // Predicated region
    $region14: #{tpu_custom_call.1} parent=1 // pred_check
      _
    $region15: #{tpu_custom_call.1} parent=1 // pred_check_branch
      %223 = sbr.rel (0) target = $region17
    $region16: #{tpu_custom_call.1} parent=1 // pred_region
      %s225 = ssub.s32 16, 16
      %226 = vsyncadd [#allocation3], %s225
      %s228 = sshll.u32 [#allocation2], 4
      %s229 = int_to_ptr.vmem [resolvable:$true] %s228
      %231 = dma.vmem_to_hbm [thread:$0]  %s229, 16, %s2, [#allocation3]
    $region17: #{tpu_custom_call.1} parent=1 // pred_fallthru
      _
    // Predicated region
    $region18: #{tpu_custom_call.1} parent=1 // pred_check
      _
    $region19: #{tpu_custom_call.1} parent=1 // pred_check_branch
      %233 = sbr.rel (0) target = $region21
    $region20: #{tpu_custom_call.1} parent=1 // pred_region
      %234 = dma.done [#allocation3], 16
    $region21: #{tpu_custom_call.1} parent=1 // pred_fallthru
      _
    %235 = vsyncpa [#allocation3], 1

</llo_original>
